<compile_context>
chip_gen: v5e
topology: v5e:2x2
jax: 0.10.0
libtpu: 0.0.40
codegen_flags: <defaults>
</compile_context>

<pallas_src>
import jax
import jax.numpy as jnp
from jax.experimental import pallas as pl
from jax.experimental.pallas import tpu as pltpu


def _round_up(x, m):
    return ((x + m - 1) // m) * m


def _vmem_limit_bytes():
    """Per-generation scoped-VMEM limit: ~96 MiB on v5e/v6e (128 MiB phys), ~48 MiB on v7x (64 MiB phys)."""
    cap = 64 << 20  # conservative fallback (v7x per-core physical VMEM)
    try:
        info = pltpu.get_tpu_info()
        cap = int(getattr(info, "vmem_capacity_bytes", cap))
    except Exception:
        pass
    cap = max(cap, 32 << 20)
    return min((cap * 3) // 4, 100 << 20)


def _plan_blocks(N, Kp, Dp, x_bytes, vmem_budget):
    """Pick (tile_block, k_block) so double-buffered blocks fit the VMEM budget."""

    def fits(tb, kb):
        need = (2 * tb * kb * x_bytes        # x block (double-buffered)
                + 2 * kb * Dp * x_bytes      # folded-weight block (double-buffered)
                + 2 * Dp * 4                 # bias (resident, double-buffered)
                + 2 * tb * Dp * 4            # output block (double-buffered)
                + tb * Dp * 4)               # accumulator scratch
        return need <= vmem_budget

    # Row block: big enough to amortise per-step overhead, but keep >= 2 steps on the
    # N grid axis (megacore sharding of the "parallel" axis) and don't over-pad tiny N.
    tb = min(512, _round_up(pl.cdiv(N, 2), 8))
    tb = max(8, tb)
    kb = Kp                                   # try a single K step (whole row strip resident)

    while not fits(tb, kb) and tb > 64:
        tb = max(64, ((tb // 2) // 8) * 8)
    while not fits(tb, kb) and kb > 128:
        kb = max(128, ((kb // 2) // 128) * 128)
    while not fits(tb, kb) and tb > 8:
        tb = max(8, ((tb // 2) // 8) * 8)
    return int(tb), int(kb)


def tile_embed_kernel(x_ref, w_ref, b_ref, o_ref, acc_ref):
    # x_ref: (tb, kb)  w_ref: (kb, Dp)  b_ref: (1, Dp)  o_ref: (tb, Dp)  acc_ref: (tb, Dp) f32
    k = pl.program_id(1)

    @pl.when(k == 0)
    def _init():
        acc_ref[...] = jnp.zeros_like(acc_ref)

    acc_ref[...] += jnp.dot(x_ref[...], w_ref[...],
                            preferred_element_type=jnp.float32)

    @pl.when(k == pl.num_programs(1) - 1)
    def _finalize():
        o_ref[...] = (acc_ref[...] + b_ref[...]).astype(o_ref.dtype)


def tile_embedder_forward(tiles_list, tiles_original_locations, w, b, *, tile_block=None):
    """
    tiles_list: list/tuple of arrays, each (B_batch_i, B_tiles, C, H, W)  (NCHW per tile)
    w: (C, D) linear weight, b: (D,) bias
    returns: (sum_i B_batch_i, B_tiles, D)
    """
    assert isinstance(tiles_list, (list, tuple))
    assert isinstance(tiles_original_locations, (list, tuple))
    assert len(tiles_original_locations) == len(tiles_list)
    # TODO(synk): patient_classification branch (per-patient list output) and the `frozen`
    #             no_grad context are not modeled; only the vstack + model forward path.

    tiles = jnp.concatenate(list(tiles_list), axis=0)          # torch.vstack semantics
    Bb, Bt, C, H, W = tiles.shape
    N, HW = Bb * Bt, H * W
    K, D = C * HW, w.shape[1]

    x_bytes = jnp.dtype(tiles.dtype).itemsize                  # bf16 inputs halve HBM reads
    Dp = _round_up(D, 128)                                     # lane-dense output stores
    Kp0 = _round_up(K, 128)                                    # lane-dense x loads / weight sublanes

    vmem_limit = _vmem_limit_bytes()
    budget = (vmem_limit * 7) // 8
    tb, kb = _plan_blocks(N, Kp0, Dp, x_bytes, budget)
    if tile_block is not None:
        tb = max(8, _round_up(int(tile_block), 8))

    Np = _round_up(N, tb)
    Kp = _round_up(Kp0, kb)

    # Fold the global average pool into the matmul: w_big[c*HW + s, d] = w[c, d] / HW.
    w_big = jnp.repeat(w.astype(jnp.float32) * (1.0 / HW), HW, axis=0).astype(tiles.dtype)
    w_big = jnp.pad(w_big, ((0, Kp - K), (0, Dp - D)))
    b_pad = jnp.pad(b.astype(jnp.float32).reshape(1, D), ((0, 0), (0, Dp - D)))

    x2d = tiles.reshape(N, K)                                  # dense 2-D: full sublane/lane packing
    if Np > N or Kp > K:
        x2d = jnp.pad(x2d, ((0, Np - N), (0, Kp - K)))

    grid = (Np // tb, Kp // kb)

    out = pl.pallas_call(
        tile_embed_kernel,
        out_shape=jax.ShapeDtypeStruct((Np, Dp), jnp.float32),
        grid_spec=pltpu.PrefetchScalarGridSpec(
            num_scalar_prefetch=0,
            grid=grid,
            in_specs=[
                pl.BlockSpec((tb, kb), lambda i, k: (i, k)),   # tile rows x reduction block
                pl.BlockSpec((kb, Dp), lambda i, k: (k, 0)),   # folded pool+linear weight block
                pl.BlockSpec((1, Dp), lambda i, k: (0, 0)),    # bias (resident)
            ],
            out_specs=pl.BlockSpec((tb, Dp), lambda i, k: (i, 0)),
            scratch_shapes=[pltpu.VMEM((tb, Dp), jnp.float32)],
        ),
        compiler_params=pltpu.CompilerParams(
            dimension_semantics=("parallel", "arbitrary"),
            vmem_limit_bytes=int(vmem_limit),
        ),
    )(x2d, w_big, b_pad)

    return out[:N, :D].reshape(Bb, Bt, D)


def _reference(tiles_list, w, b):
    tiles = jnp.concatenate(list(tiles_list), axis=0)
    pooled = jnp.mean(tiles.astype(jnp.float32), axis=(-2, -1))   # (Bb, Bt, C)
    return pooled @ w + b                                         # (Bb, Bt, D)


if __name__ == "__main__":
    key = jax.random.PRNGKey(0)
    k1, k2, k3, k4 = jax.random.split(key, 4)

    # Small shapes: 2 WSIs (as a list of two 1-WSI tensors), 8 tiles each,
    # 4 channels, 8x8 spatial, latent size 32.
    B_tiles, C, H, W, D = 8, 4, 8, 8, 32
    tiles_a = jax.random.normal(k1, (1, B_tiles, C, H, W), dtype=jnp.float32)
    tiles_b = jax.random.normal(k2, (1, B_tiles, C, H, W), dtype=jnp.float32)
    tiles_list = [tiles_a, tiles_b]
    tiles_locations = [jnp.zeros((1, B_tiles, 2)), jnp.zeros((1, B_tiles, 2))]

    # Deterministic synthetic parameters for the embedder's Linear(C -> D).
    w = (jax.random.normal(k3, (C, D), dtype=jnp.float32) / jnp.sqrt(C)).astype(jnp.float32)
    b = jax.random.normal(k4, (D,), dtype=jnp.float32) * 0.01

    out = tile_embedder_forward(tiles_list, tiles_locations, w, b)
    out = jax.block_until_ready(out)

    ref = _reference(tiles_list, w, b)
    assert out.shape == (2, B_tiles, D), out.shape
    assert jnp.allclose(out, ref, atol=1e-4, rtol=1e-4), "mismatch vs reference"

    print("KERNEL_OK")
</pallas_src>

<mosaic_0001>
module attributes {stable_mosaic.version = 11 : i64} {
  func.func @tile_embed_kernel(%arg0: i32, %arg1: i32, %arg2: memref<8x256xf32, #tpu.memory_space<vmem>>, %arg3: memref<256x128xf32, #tpu.memory_space<vmem>>, %arg4: memref<1x128xf32, #tpu.memory_space<vmem>>, %arg5: memref<8x128xf32, #tpu.memory_space<vmem>>, %arg6: memref<8x128xf32, #tpu.memory_space<vmem>>) attributes {dimension_semantics = [#tpu.dimension_semantics<parallel>, #tpu.dimension_semantics<arbitrary>], iteration_bounds = array<i64: 2, 1>, scalar_prefetch = 0 : i64, scratch_operands = 1 : i64, tpu.core_type = #tpu.core_type<tc>, window_params = [{transform_indices = @transform_0, window_bounds = array<i64: 8, 256>}, {transform_indices = @transform_1, window_bounds = array<i64: 256, 128>}, {pipeline_mode = #tpu.pipeline_mode<synchronous>, transform_indices = @transform_2, window_bounds = array<i64: 1, 128>}, {transform_indices = @transform_3, window_bounds = array<i64: 8, 128>}]} {
    %c0_i32 = arith.constant 0 : i32
    %0 = arith.cmpi eq, %arg1, %c0_i32 : i32
    %1 = arith.extui %0 : i1 to i32
    %c0_i32_0 = arith.constant 0 : i32
    %2 = arith.cmpi ne, %1, %c0_i32_0 : i32
    scf.if %2 {
      %cst_10 = arith.constant 0.000000e+00 : f32
      %12 = vector.broadcast %cst_10 : f32 to vector<8x128xf32>
      %c0_11 = arith.constant 0 : index
      %c0_12 = arith.constant 0 : index
      %13 = vector.load %arg6[%c0_11, %c0_12] : memref<8x128xf32, #tpu.memory_space<vmem>>, vector<8x128xf32>
      tpu.vector_store %arg6[%c0_11, %c0_12], %12 {strides = array<i32>} : memref<8x128xf32, #tpu.memory_space<vmem>>, vector<8x128xf32>,
    } else {
    }
    %c0 = arith.constant 0 : index
    %c0_1 = arith.constant 0 : index
    %3 = vector.load %arg6[%c0, %c0_1] : memref<8x128xf32, #tpu.memory_space<vmem>>, vector<8x128xf32>
    %c0_2 = arith.constant 0 : index
    %c0_3 = arith.constant 0 : index
    %4 = vector.load %arg2[%c0_2, %c0_3] : memref<8x256xf32, #tpu.memory_space<vmem>>, vector<8x256xf32>
    %c0_4 = arith.constant 0 : index
    %c0_5 = arith.constant 0 : index
    %5 = vector.load %arg3[%c0_4, %c0_5] : memref<256x128xf32, #tpu.memory_space<vmem>>, vector<256x128xf32>
    %cst = arith.constant dense<0.000000e+00> : vector<8x128xf32>
    %6 = tpu.matmul %4, %5, %cst {dimension_numbers = #tpu.dot_dimension_numbers<[1], [0], [0], [1], [0, 0, 1, 1], [], []>} : vector<8x256xf32>, vector<256x128xf32>, vector<8x128xf32> -> vector<8x128xf32>
    %7 = arith.addf %3, %6 : vector<8x128xf32>
    %c0_6 = arith.constant 0 : index
    %c0_7 = arith.constant 0 : index
    %8 = vector.load %arg6[%c0_6, %c0_7] : memref<8x128xf32, #tpu.memory_space<vmem>>, vector<8x128xf32>
    tpu.vector_store %arg6[%c0_6, %c0_7], %7 {strides = array<i32>} : memref<8x128xf32, #tpu.memory_space<vmem>>, vector<8x128xf32>,
    %c0_i32_8 = arith.constant 0 : i32
    %9 = arith.cmpi eq, %arg1, %c0_i32_8 : i32
    %10 = arith.extui %9 : i1 to i32
    %c0_i32_9 = arith.constant 0 : i32
    %11 = arith.cmpi ne, %10, %c0_i32_9 : i32
    scf.if %11 {
      %c0_10 = arith.constant 0 : index
      %c0_11 = arith.constant 0 : index
      %12 = vector.load %arg6[%c0_10, %c0_11] : memref<8x128xf32, #tpu.memory_space<vmem>>, vector<8x128xf32>
      %c0_12 = arith.constant 0 : index
      %c0_13 = arith.constant 0 : index
      %13 = vector.load %arg4[%c0_12, %c0_13] : memref<1x128xf32, #tpu.memory_space<vmem>>, vector<1x128xf32>
      %14 = vector.broadcast %13 : vector<1x128xf32> to vector<8x128xf32>
      %15 = arith.addf %12, %14 : vector<8x128xf32>
      %c0_14 = arith.constant 0 : index
      %c0_15 = arith.constant 0 : index
      %16 = vector.load %arg5[%c0_14, %c0_15] : memref<8x128xf32, #tpu.memory_space<vmem>>, vector<8x128xf32>
      tpu.vector_store %arg5[%c0_14, %c0_15], %15 {strides = array<i32>} : memref<8x128xf32, #tpu.memory_space<vmem>>, vector<8x128xf32>,
    } else {
    }
    return
  }
  func.func @transform_0(%arg0: i32, %arg1: i32) -> (i32, i32) {
    %c0_i32 = arith.constant 0 : i32
    return %arg0, %arg1 : i32, i32
  }
  func.func @transform_1(%arg0: i32, %arg1: i32) -> (i32, i32) {
    %c0_i32 = arith.constant 0 : i32
    %c0_i32_0 = arith.constant 0 : i32
    return %arg1, %c0_i32 : i32, i32
  }
  func.func @transform_2(%arg0: i32, %arg1: i32) -> (i32, i32) {
    %c0_i32 = arith.constant 0 : i32
    %c0_i32_0 = arith.constant 0 : i32
    %c0_i32_1 = arith.constant 0 : i32
    return %c0_i32, %c0_i32_0 : i32, i32
  }
  func.func @transform_3(%arg0: i32, %arg1: i32) -> (i32, i32) {
    %c0_i32 = arith.constant 0 : i32
    %c0_i32_0 = arith.constant 0 : i32
    return %arg0, %c0_i32 : i32, i32
  }
}

</mosaic_0001>

<llo_original>
// kernel: tpu_custom_call.1
$region0: #{tpu_custom_call.1}
  #allocation0 [shape = 'u32[]', space=smem, size = 0x4, offset = 0x4, fixed_abs, tag = 'smem constant byte address 0x4 - core index']
  #allocation1 [shape = 'u32[72,128]{1,0:T(1,128)}', space=vmem, size = 0x9000, scoped, tag = 'internal scratch']
  #allocation2 [shape = 'f32[8,128]{1,0:T(8,128)}', space=vmem, size = 0x1000, scoped, tag = 'scratch operand']
  %s0 = inlined_call_operand.hbm [shape: f32[16,256], index: 0, kind: input, shape index: {}]
  %s1 = inlined_call_operand.hbm [shape: f32[256,128], index: 1, kind: input, shape index: {}]
  %s2 = inlined_call_operand.vmem [shape: f32[1,128], index: 2, kind: input, shape index: {}]
  %s3 = inlined_call_operand.hbm [shape: f32[16,128], index: 3, kind: output, shape index: {}]
  %s4 = sld [smem:[#allocation0]]
  $region61: #{tpu_custom_call.1} parent=0
    _
  %s6 = ssub.s32 1, %s4
  %s7 = scalar_select 0, %s6, %s4
  $region1: #{tpu_custom_call.1} parent=0
    #allocation3 [shape = 'u8[16384]{0}', space=vmem, size = 0x4000, scoped, tag = 'input window, operand 0']
    #allocation4 [shape = 's32[2]{0}', space=sflag, size = 0x8, scoped, tag = 'scoped memory for tpu_custom_call.1']
    #allocation5 [shape = 's32[2]{0}', space=sflag, size = 0x8, scoped, tag = 'scoped memory for tpu_custom_call.1']
    #allocation6 [shape = 'u8[131072]{0}', space=vmem, size = 0x20000, scoped, tag = 'input window, operand 1, single buffered']
    #allocation7 [shape = 's32[1]{0}', space=sflag, size = 0x4, scoped, tag = 'scoped memory for tpu_custom_call.1']
    #allocation8 [shape = 'u8[8192]{0}', space=vmem, size = 0x2000, scoped, tag = 'output window, operand 0']
    %8 = vsyncpa [#allocation4], 0
    %s9 = scalar_lea.sflag [#allocation4], 1
    %10 = vsyncpa %s9, 0
    %11 = vsyncpa [#allocation7], 0
    %12 = vsyncpa [#allocation5], 0
    %s13 = scalar_lea.sflag [#allocation5], 1
    %14 = vsyncpa %s13, 0
    loop: start=0, step=1, limit=4
    $region2: #{tpu_custom_call.1} parent=1 // loop_pre_header
      _
    $region3: #{tpu_custom_call.1} parent=1 // loop_header
      %s16 = sphi 0, %s20
      %p17 = scmp.ge.s32.totalorder %s16, 4
      %s23 = sphi 0, %s35
      %s24 = sphi 0, %s31
      %s25 = sphi 0, %s23
      %s26 = sphi 0, %s24
      %s27 = sphi 0, %s25
      %s28 = sphi 0, %s26
      %s40 = sphi 0, %s42
      %s43 = sphi 0, %s40
      %s44 = sphi 0, %s43
      %s60 = sphi 0, %s44
      %s66 = sphi 0, %s68
      %s69 = sphi 0, %s66
      %s70 = sphi 0, %s69
      %s86 = sphi 0, %s70
      %s90 = sphi 0, %s90
      %s92 = sphi 0, %s90
      %s93 = sphi 0, %s92
      %s107 = sphi 0, %s93
      %s113 = sphi 0, %s115
      %s116 = sphi 0, %s113
      %s117 = sphi 0, %s116
      %s133 = sphi 0, %s117
    $region4: #{tpu_custom_call.1} parent=1 // loop_header_branch
      %19 = sbr.rel (%p17) target = $region8
    $region5: #{tpu_custom_call.1} parent=1 // loop_body
      %s21 = ssub.s32 %s16, 1
      %s22 = ssub.s32 %s16, 2
      %s29 = sadd.s32 1, %s24
      %p30 = scmp.ge.s32.totalorder %s29, 1
      %s31 = scalar_select %p30, 0, %s29
      %s32 = sadd.s32 1, %s23
      %s33 = scalar_select %p30, %s32, %s23
      %p34 = scmp.ge.s32.totalorder %s33, 2
      %s35 = scalar_select %p34, 0, %s33
      %s36 = ssub.s32 %s23, %s35
      %s37 = ssub.s32 %s24, %s31
      %s38 = sor.u32 %s36, %s37
      %p39 = scmp.eq.s32.totalorder %s38, 0
      %s41 = sadd.s32 %s40, 1
      %s42 = scalar_select %p39, %s40, %s41
      %p45 = pneg %p39
      %p46 = scmp.eq.s32.totalorder %s16, 1
      %p47 = por %p45, %p46
      %p48 = scmp.ne.s32.totalorder %s40, %s43
      %p49 = scmp.eq.s32.totalorder %s16, 0
      %p50 = por %p48, %p49
      %p51 = scmp.ne.s32.totalorder %s40, %s43
      %p52 = scmp.eq.s32.totalorder %s21, 1
      %p53 = por %p51, %p52
      %p54 = scmp.ne.s32.totalorder %s43, %s44
      %p55 = scmp.eq.s32.totalorder %s21, 0
      %p56 = por %p54, %p55
      %p57 = scmp.ne.s32.totalorder %s43, %s44
      %p58 = scmp.eq.s32.totalorder %s22, 1
      %p59 = por %p57, %p58
      %p61 = scmp.ne.s32.totalorder %s44, %s60
      %p62 = scmp.eq.s32.totalorder %s22, 0
      %p63 = por %p61, %p62
      %s64 = ssub.s32 %s24, %s31
      %p65 = scmp.eq.s32.totalorder %s64, 0
      %s67 = sadd.s32 %s66, 1
      %s68 = scalar_select %p65, %s66, %s67
      %p71 = pneg %p65
      %p72 = scmp.eq.s32.totalorder %s16, 1
      %p73 = por %p71, %p72
      %p74 = scmp.ne.s32.totalorder %s66, %s69
      %p75 = scmp.eq.s32.totalorder %s16, 0
      %p76 = por %p74, %p75
      %p77 = scmp.ne.s32.totalorder %s66, %s69
      %p78 = scmp.eq.s32.totalorder %s21, 1
      %p79 = por %p77, %p78
      %p80 = scmp.ne.s32.totalorder %s69, %s70
      %p81 = scmp.eq.s32.totalorder %s21, 0
      %p82 = por %p80, %p81
      %p83 = scmp.ne.s32.totalorder %s69, %s70
      %p84 = scmp.eq.s32.totalorder %s22, 1
      %p85 = por %p83, %p84
      %p87 = scmp.ne.s32.totalorder %s70, %s86
      %p88 = scmp.eq.s32.totalorder %s22, 0
      %p89 = por %p87, %p88
      %s91 = sadd.s32 %s90, 1
      %p94 = scmp.eq.s32.totalorder %s16, 1
      %p95 = scmp.ne.s32.totalorder %s90, %s92
      %p96 = scmp.eq.s32.totalorder %s16, 0
      %p97 = por %p95, %p96
      %p98 = scmp.ne.s32.totalorder %s90, %s92
      %p99 = scmp.eq.s32.totalorder %s21, 1
      %p100 = por %p98, %p99
      %p101 = scmp.ne.s32.totalorder %s92, %s93
      %p102 = scmp.eq.s32.totalorder %s21, 0
      %p103 = por %p101, %p102
      %p104 = scmp.ne.s32.totalorder %s92, %s93
      %p105 = scmp.eq.s32.totalorder %s22, 1
      %p106 = por %p104, %p105
      %p108 = scmp.ne.s32.totalorder %s93, %s107
      %p109 = scmp.eq.s32.totalorder %s22, 0
      %p110 = por %p108, %p109
      %s111 = ssub.s32 %s23, %s35
      %p112 = scmp.eq.s32.totalorder %s111, 0
      %s114 = sadd.s32 %s113, 1
      %s115 = scalar_select %p112, %s113, %s114
      %p118 = pneg %p112
      %p119 = scmp.eq.s32.totalorder %s16, 1
      %p120 = por %p118, %p119
      %p121 = scmp.ne.s32.totalorder %s113, %s116
      %p122 = scmp.eq.s32.totalorder %s16, 0
      %p123 = por %p121, %p122
      %p124 = scmp.ne.s32.totalorder %s113, %s116
      %p125 = scmp.eq.s32.totalorder %s21, 1
      %p126 = por %p124, %p125
      %p127 = scmp.ne.s32.totalorder %s116, %s117
      %p128 = scmp.eq.s32.totalorder %s21, 0
      %p129 = por %p127, %p128
      %p130 = scmp.ne.s32.totalorder %s116, %s117
      %p131 = scmp.eq.s32.totalorder %s22, 1
      %p132 = por %p130, %p131
      %p134 = scmp.ne.s32.totalorder %s117, %s133
      %p135 = scmp.eq.s32.totalorder %s22, 0
      %p136 = por %p134, %p135
      %p137 = scmp.le.s32.totalorder 1, %s16
      %p138 = scmp.lt.s32.totalorder %s16, 3
      %p139 = pnand %p137, %p138
      %p140 = pneg %p139
      // Predicated region
      $region9: #{tpu_custom_call.1} parent=5 // pred_check
        _
      $region10: #{tpu_custom_call.1} parent=5 // pred_check_branch
        %142 = sbr.rel (%p139) target = $region12
      $region11: #{tpu_custom_call.1} parent=5 // pred_region
        %s143 = ssub.s32 %s16, 1
        // Predicated region
        $region13: #{tpu_custom_call.1} parent=11 // pred_check
          %p144 = pneg %p82
        $region14: #{tpu_custom_call.1} parent=11 // pred_check_branch
          %146 = sbr.rel (%p144) target = $region16
        $region15: #{tpu_custom_call.1} parent=11 // pred_region
          %s147 = smul.u32 32, %s26
          %149 = vsyncadd [#allocation7], 0
          %s150 = smul.addr %s147, 8
          %s151 = scalar_lea.hbm %s1, %s150
          %s152 = sshll.u32 %s151, 4
          %s153 = int_to_ptr.hbm [resolvable:$true] %s152
          %s154 = sshll.u32 [#allocation6], 4
          %s155 = int_to_ptr.vmem [resolvable:$true] %s154
          %160 = dma.hbm_to_vmem [thread:$0]  %s153, 4096, %s155, [#allocation7], 128, 128, 8
        $region16: #{tpu_custom_call.1} parent=11 // pred_fallthru
          _
        // Predicated region
        $region17: #{tpu_custom_call.1} parent=11 // pred_check
          %p161 = pneg %p103
        $region18: #{tpu_custom_call.1} parent=11 // pred_check_branch
          %163 = sbr.rel (%p161) target = $region20
        $region19: #{tpu_custom_call.1} parent=11 // pred_region
          _
        $region20: #{tpu_custom_call.1} parent=11 // pred_fallthru
          _
      $region12: #{tpu_custom_call.1} parent=5 // pred_fallthru
        _
      %p164 = scmp.lt.s32.totalorder %s16, 2
      // Predicated region
      $region21: #{tpu_custom_call.1} parent=5 // pred_check
        %p165 = pneg %p164
      $region22: #{tpu_custom_call.1} parent=5 // pred_check_branch
        %167 = sbr.rel (%p165) target = $region24
      $region23: #{tpu_custom_call.1} parent=5 // pred_region
        // Predicated region
        $region25: #{tpu_custom_call.1} parent=23 // pred_check
          %p168 = pneg %p50
        $region26: #{tpu_custom_call.1} parent=23 // pred_check_branch
          %170 = sbr.rel (%p168) target = $region28
        $region27: #{tpu_custom_call.1} parent=23 // pred_region
          %s171 = sand.u32 %s40, 1
          %s172 = scalar_lea.sflag [#allocation4], %s171
          %s173 = sand.u32 %s40, 1
          %s174 = smul.addr %s173, 16
          %s175 = scalar_lea.vmem [#allocation3], %s174
          %s176 = smul.u32 2, %s24
          %178 = vsyncadd %s172, 0
          %s179 = smul.addr %s23, 2
          %s180 = sadd.s32 %s176, %s179
          %s181 = smul.addr %s180, 8
          %s182 = scalar_lea.hbm %s0, %s181
          %s184 = sshll.u32 %s182, 4
          %s185 = int_to_ptr.hbm [resolvable:$true] %s184
          %s186 = sshll.u32 %s175, 4
          %s187 = int_to_ptr.vmem [resolvable:$true] %s186
          %189 = dma.hbm_to_vmem [thread:$0]  %s185, 256, %s187, %s172
        $region28: #{tpu_custom_call.1} parent=23 // pred_fallthru
          _
      $region24: #{tpu_custom_call.1} parent=5 // pred_fallthru
        _
      %p190 = scmp.le.s32.totalorder 1, %s16
      %p191 = scmp.lt.s32.totalorder %s16, 3
      %p192 = pnand %p190, %p191
      %p193 = pneg %p192
      // Predicated region
      $region29: #{tpu_custom_call.1} parent=5 // pred_check
        _
      $region30: #{tpu_custom_call.1} parent=5 // pred_check_branch
        %195 = sbr.rel (%p192) target = $region32
      $region31: #{tpu_custom_call.1} parent=5 // pred_region
        %s196 = ssub.s32 %s16, 1
        %s197 = sand.u32 %s43, 1
        %s198 = scalar_lea.sflag [#allocation4], %s197
        %s199 = sand.u32 %s43, 1
        %s200 = smul.addr %s199, 16
        %s201 = scalar_lea.vmem [#allocation3], %s200
        // Predicated region
        $region33: #{tpu_custom_call.1} parent=31 // pred_check
          %p202 = pneg %p56
        $region34: #{tpu_custom_call.1} parent=31 // pred_check_branch
          %204 = sbr.rel (%p202) target = $region36
        $region35: #{tpu_custom_call.1} parent=31 // pred_region
          %206 = dma.done %s198, 256
        $region36: #{tpu_custom_call.1} parent=31 // pred_fallthru
          _
        // Predicated region
        $region37: #{tpu_custom_call.1} parent=31 // pred_check
          %p207 = pneg %p82
        $region38: #{tpu_custom_call.1} parent=31 // pred_check_branch
          %209 = sbr.rel (%p207) target = $region40
        $region39: #{tpu_custom_call.1} parent=31 // pred_region
          %211 = dma.done [#allocation7], 4096
        $region40: #{tpu_custom_call.1} parent=31 // pred_fallthru
          _
        %s212 = sand.u32 %s43, 1
        %s213 = scalar_lea.sflag [#allocation4], %s212
        %s214 = sand.u32 %s43, 1
        %s215 = smul.addr %s214, 16
        %s216 = scalar_lea.vmem [#allocation3], %s215
        %p217 = pneg %p56
        %p218 = pneg %p53
        %p219 = pneg %p82
        %p220 = pneg %p79
        %p221 = pneg %p103
        %p222 = pneg %p100
        %p223 = pneg %p129
        %p224 = pneg %p126
        %s225 = sand.u32 %s116, 1
        %s226 = scalar_lea.sflag [#allocation5], %s225
        %s227 = sand.u32 %s116, 1
        %s228 = smul.addr %s227, 8
        %s229 = scalar_lea.vmem [#allocation8], %s228
        %s230 = smul.u32 2, %s26
        %s231 = smul.u32 32, %s26
        %p232 = scmp.eq.s32.totalorder %s26, 0
        // Predicated region
        $region41: #{tpu_custom_call.1} parent=31 // pred_check
          %p233 = pneg %p232
        $region42: #{tpu_custom_call.1} parent=31 // pred_check_branch
          %235 = sbr.rel (%p233) target = $region44
        $region43: #{tpu_custom_call.1} parent=31 // pred_region
          %236 = vst [vmem:[#allocation2] sm:$0xff] 0.0
        $region44: #{tpu_custom_call.1} parent=31 // pred_fallthru
          _
        %v237 = vld [vmem:[#allocation2] sm:$0xff]
        %v238 = vld [vmem:[%s201] sm:$0xff]
        %v239 = vld [vmem:[%s201 + $0x8] sm:$0xff]
        %v240 = vld [vmem:[#allocation6] sm:$0xff]
        %v241 = vld [vmem:[#allocation6 + $0x8] sm:$0xff]
        %v242 = vld [vmem:[#allocation6 + $0x10] sm:$0xff]
        %v243 = vld [vmem:[#allocation6 + $0x18] sm:$0xff]
        %v244 = vld [vmem:[#allocation6 + $0x20] sm:$0xff]
        %v245 = vld [vmem:[#allocation6 + $0x28] sm:$0xff]
        %v246 = vld [vmem:[#allocation6 + $0x30] sm:$0xff]
        %v247 = vld [vmem:[#allocation6 + $0x38] sm:$0xff]
        %v248 = vld [vmem:[#allocation6 + $0x40] sm:$0xff]
        %v249 = vld [vmem:[#allocation6 + $0x48] sm:$0xff]
        %v250 = vld [vmem:[#allocation6 + $0x50] sm:$0xff]
        %v251 = vld [vmem:[#allocation6 + $0x58] sm:$0xff]
        %v252 = vld [vmem:[#allocation6 + $0x60] sm:$0xff]
        %v253 = vld [vmem:[#allocation6 + $0x68] sm:$0xff]
        %v254 = vld [vmem:[#allocation6 + $0x70] sm:$0xff]
        %v255 = vld [vmem:[#allocation6 + $0x78] sm:$0xff]
        %v256 = vld [vmem:[#allocation6 + $0x80] sm:$0xff]
        %v257 = vld [vmem:[#allocation6 + $0x88] sm:$0xff]
        %v258 = vld [vmem:[#allocation6 + $0x90] sm:$0xff]
        %v259 = vld [vmem:[#allocation6 + $0x98] sm:$0xff]
        %v260 = vld [vmem:[#allocation6 + $0xa0] sm:$0xff]
        %v261 = vld [vmem:[#allocation6 + $0xa8] sm:$0xff]
        %v262 = vld [vmem:[#allocation6 + $0xb0] sm:$0xff]
        %v263 = vld [vmem:[#allocation6 + $0xb8] sm:$0xff]
        %v264 = vld [vmem:[#allocation6 + $0xc0] sm:$0xff]
        %v265 = vld [vmem:[#allocation6 + $0xc8] sm:$0xff]
        %v266 = vld [vmem:[#allocation6 + $0xd0] sm:$0xff]
        %v267 = vld [vmem:[#allocation6 + $0xd8] sm:$0xff]
        %v268 = vld [vmem:[#allocation6 + $0xe0] sm:$0xff]
        %v269 = vld [vmem:[#allocation6 + $0xe8] sm:$0xff]
        %v270 = vld [vmem:[#allocation6 + $0xf0] sm:$0xff]
        %v271 = vld [vmem:[#allocation6 + $0xf8] sm:$0xff]
        %272 = vmatpush.msra.mxu0 %v255
        %273 = vmatpush.msra.mxu0 %v254
        %274 = vmatpush.msra.mxu0 %v253
        %275 = vmatpush.msra.mxu0 %v252
        %276 = vmatpush.msra.mxu0 %v251
        %277 = vmatpush.msra.mxu0 %v250
        %278 = vmatpush.msra.mxu0 %v249
        %279 = vmatpush.msra.mxu0 %v248
        %280 = vmatpush.msra.mxu0 %v247
        %281 = vmatpush.msra.mxu0 %v246
        %282 = vmatpush.msra.mxu0 %v245
        %283 = vmatpush.msra.mxu0 %v244
        %284 = vmatpush.msra.mxu0 %v243
        %285 = vmatpush.msra.mxu0 %v242
        %286 = vmatpush.msra.mxu0 %v241
        %287 = vmatpush.msra.mxu0 %v240
        %288 = vmatmul.f32.gmra.mxu0 %v238
        %v289 = vpop.f32.mrf.mxu0
        %v290 = vadd.f32 0.0, %v289
        %291 = vdwg.mxu0
        %292 = vmatpush.msra.mxu0 %v271
        %293 = vmatpush.msra.mxu0 %v270
        %294 = vmatpush.msra.mxu0 %v269
        %295 = vmatpush.msra.mxu0 %v268
        %296 = vmatpush.msra.mxu0 %v267
        %297 = vmatpush.msra.mxu0 %v266
        %298 = vmatpush.msra.mxu0 %v265
        %299 = vmatpush.msra.mxu0 %v264
        %300 = vmatpush.msra.mxu0 %v263
        %301 = vmatpush.msra.mxu0 %v262
        %302 = vmatpush.msra.mxu0 %v261
        %303 = vmatpush.msra.mxu0 %v260
        %304 = vmatpush.msra.mxu0 %v259
        %305 = vmatpush.msra.mxu0 %v258
        %306 = vmatpush.msra.mxu0 %v257
        %307 = vmatpush.msra.mxu0 %v256
        %308 = vmatmul.f32.gmra.mxu0 %v239
        %v309 = vpop.f32.mrf.mxu0
        %v310 = vadd.f32 %v290, %v309
        %311 = vdwg.mxu0
        %v312 = vadd.f32 %v237, %v310
        %313 = vst [vmem:[#allocation2] sm:$0xff] %v312
        // Predicated region
        $region45: #{tpu_custom_call.1} parent=31 // pred_check
          %p314 = pneg %p232
        $region46: #{tpu_custom_call.1} parent=31 // pred_check_branch
          %316 = sbr.rel (%p314) target = $region48
        $region47: #{tpu_custom_call.1} parent=31 // pred_region
          %v317 = vld [vmem:[#allocation2] sm:$0xff]
          %v318 = vld [vmem:[%s2] sm:$0x1]
          %v320 = vperm.slane %v318, 0
          %v322 = vadd.f32 %v317, %v320
          %323 = vst [vmem:[%s229] sm:$0xff] %v322
        $region48: #{tpu_custom_call.1} parent=31 // pred_fallthru
          _
        %s324 = sand.u32 %s116, 1
        %s325 = scalar_lea.sflag [#allocation5], %s324
        %s326 = sand.u32 %s116, 1
        %s327 = smul.addr %s326, 8
        %s328 = scalar_lea.vmem [#allocation8], %s327
        // Predicated region
        $region49: #{tpu_custom_call.1} parent=31 // pred_check
          %p329 = pneg %p126
        $region50: #{tpu_custom_call.1} parent=31 // pred_check_branch
          %331 = sbr.rel (%p329) target = $region52
        $region51: #{tpu_custom_call.1} parent=31 // pred_region
          %333 = vsyncadd %s325, 0
          %s334 = smul.addr %s25, 8
          %s335 = scalar_lea.hbm %s3, %s334
          %s337 = sshll.u32 %s328, 4
          %s338 = int_to_ptr.vmem [resolvable:$true] %s337
          %s339 = sshll.u32 %s335, 4
          %s340 = int_to_ptr.hbm [resolvable:$true] %s339
          %342 = dma.vmem_to_hbm [thread:$0]  %s338, 128, %s340, %s325
        $region52: #{tpu_custom_call.1} parent=31 // pred_fallthru
          _
      $region32: #{tpu_custom_call.1} parent=5 // pred_fallthru
        _
      %p343 = scmp.le.s32.totalorder 2, %s16
      // Predicated region
      $region53: #{tpu_custom_call.1} parent=5 // pred_check
        %p344 = pneg %p343
      $region54: #{tpu_custom_call.1} parent=5 // pred_check_branch
        %346 = sbr.rel (%p344) target = $region56
      $region55: #{tpu_custom_call.1} parent=5 // pred_region
        %s347 = ssub.s32 %s16, 2
        // Predicated region
        $region57: #{tpu_custom_call.1} parent=55 // pred_check
          %p348 = pneg %p132
        $region58: #{tpu_custom_call.1} parent=55 // pred_check_branch
          %350 = sbr.rel (%p348) target = $region60
        $region59: #{tpu_custom_call.1} parent=55 // pred_region
          %s351 = sand.u32 %s117, 1
          %s352 = scalar_lea.sflag [#allocation5], %s351
          %s353 = sand.u32 %s117, 1
          %s354 = smul.addr %s353, 8
          %s355 = scalar_lea.vmem [#allocation8], %s354
          %357 = dma.done %s352, 128
        $region60: #{tpu_custom_call.1} parent=55 // pred_fallthru
          _
      $region56: #{tpu_custom_call.1} parent=5 // pred_fallthru
        _
    $region6: #{tpu_custom_call.1} parent=1 // loop_footer
      %s20 = sadd.s32 1, %s16
    $region7: #{tpu_custom_call.1} parent=1 // loop_footer_branch
      %15 = sbr.rel target = $region3
    $region8: #{tpu_custom_call.1} parent=1 // loop_exit
      _
    %358 = vsyncpa [#allocation4], 1
    %s359 = scalar_lea.sflag [#allocation4], 1
    %360 = vsyncpa %s359, 1
    %361 = vsyncpa [#allocation7], 1
    %362 = vsyncpa [#allocation5], 1
    %s363 = scalar_lea.sflag [#allocation5], 1
    %364 = vsyncpa %s363, 1

</llo_original>
